<compile_context>
chip_gen: v6e
topology: v6e:2x2x1
jax: 0.10.0
libtpu: 0.0.40
codegen_flags: <defaults>
</compile_context>

<pallas_src>
import functools

import jax
import jax.numpy as jnp
from jax.experimental import pallas as pl
from jax.experimental.pallas import tpu as pltpu


_LANES = (1024, 512, 256, 128)


def _dcp_kernel(dc_ref, a_ref, b_ref, c_ref, x_ref, o_ref, *, hidden, chunk,
                compute_dtype):
    """Per tile: out = d_center*x + sum_h relu(a_h*x + b_h) * c_h (c pre-scaled)."""
    cdt = compute_dtype
    d_center = dc_ref[0]  # f32 scalar

    # Hoisted to tile scope: the 3*hidden SMEM scalar reads (and their cast to
    # the compute dtype) happen once per tile, not once per chunk.
    a_s = [a_ref[h].astype(cdt) for h in range(hidden)]
    b_s = [b_ref[h].astype(cdt) for h in range(hidden)]
    c_s = [c_ref[h].astype(cdt) for h in range(hidden)]

    n_chunks = x_ref.shape[0] // chunk  # static

    # Register-resident chunk loop: load a few vregs of x once, keep the
    # accumulator in vregs across the unrolled hidden chain, store once.
    @pl.loop(0, n_chunks)
    def _(i):
        r = pl.multiple_of(i * chunk, chunk)
        x32 = x_ref[pl.ds(r, chunk), :].astype(jnp.float32)
        xc = x32.astype(cdt)                       # packed bf16 on v6e/v7x
        acc = jnp.zeros(xc.shape, cdt)
        for h in range(hidden):                    # unrolled scalar-broadcast chain
            acc = acc + jnp.maximum(a_s[h] * xc + b_s[h], 0) * c_s[h]
        out = d_center * x32 + acc.astype(jnp.float32)
        o_ref[pl.ds(r, chunk), :] = out.astype(o_ref.dtype)


def _plan(total, itemsize, target_block_bytes):
    """Pick (lane, tm, grid, rows_padded) for the flattened (rows, lane) slab.

    Preference order:
      1. pad-free layout with an even grid >= 4 (>= 2 balanced steps per v7x
         TensorCore) and tm >= 128 rows,
      2. any pad-free layout (divisor tm >= 128, or a single block),
      3. padded layout where the grid count is chosen first, so zero padding
         is bounded by ~grid*16 rows rather than up to tm rows.
    """
    fallback = None
    for lane in _LANES:  # widest lane first: widest unmasked vst slabs
        if total % lane:
            continue
        rows = total // lane
        cap_rows = max(16, (target_block_bytes // (lane * itemsize)) // 16 * 16)
        if rows % 16 == 0 and rows >= 256:
            ok = None
            for tm in range(min(cap_rows, rows), 127, -16):
                if rows % tm:
                    continue
                g = rows // tm
                if g >= 4 and g % 2 == 0:
                    return lane, tm, g, rows           # preferred plan
                if ok is None:
                    ok = (lane, tm, g, rows)
            if fallback is None and ok is not None:
                fallback = ok
        if fallback is None and rows <= cap_rows:
            fallback = (lane, rows, 1, rows)           # pad-free single block
    if fallback is not None:
        return fallback

    # Ragged fallback: choose the grid first, then tm = roundup(rows/grid, 16),
    # so padding never exceeds ~grid*16 rows.
    lane = 512
    rows = pl.cdiv(total, lane)
    cap_rows = max(16, (target_block_bytes // (lane * itemsize)) // 16 * 16)
    max_g = max(1, pl.cdiv(rows, 16))   # every step keeps >= 16 real rows
    g = pl.cdiv(rows, cap_rows)
    if rows >= 256:
        g = max(g, 4)                   # >= 2 steps per v7x TensorCore
    if g % 2 and g + 1 <= max_g:
        g += 1                          # even grid: balanced 2-TC split
    g = min(g, max_g)
    tm = pl.cdiv(pl.cdiv(rows, g), 16) * 16
    return lane, tm, g, g * tm


def _default_compute_dtype():
    """Packed bf16 VPU math on bf16-capable VALUs (v6e / v7x); f32 otherwise."""
    try:
        kind = jax.devices()[0].device_kind.lower()
    except Exception:  # pragma: no cover
        return jnp.float32
    if any(tag in kind for tag in ("v2", "v3", "v4", "v5")):
        return jnp.float32              # no bf16 VALU on v5e/v5p and older
    return jnp.bfloat16


def deriv_constrained_perceptron(X, a, b, c_hat, dmin, dmax, *,
                                 compute_dtype=None,
                                 target_block_bytes=2 << 20):
    """JAX/Pallas equivalent of DerivConstrainedPerceptron.forward.

    target_block_bytes=2 MiB -> double-buffered in+out footprint ~8 MiB: safe
    under v5e's 16 MiB scoped-VMEM default and v7x's 64 MiB physical VMEM.
    """
    if compute_dtype is None:
        compute_dtype = _default_compute_dtype()

    d_center = (dmin + dmax) / 2.0
    d_range = (dmax - dmin) / 2.0
    hidden = int(a.shape[0])

    # Parameter transform (compute_c) — tiny glue, plain JAX.
    a32 = a.astype(jnp.float32)
    b32 = b.astype(jnp.float32)
    ch32 = c_hat.astype(jnp.float32)
    ca_norm = jnp.linalg.norm(a32) * jnp.linalg.norm(ch32)
    # Eps guard deviates from the reference only when ||a||*||c_hat|| == 0
    # (reference would produce NaN there); benign, documented on purpose.
    scale_factor = 1.0 - jnp.maximum(ca_norm - 1.0, 0.0) / jnp.maximum(ca_norm, 1e-30)
    # Fold d_range and the compute_c scaling into c -> saves a full-tile multiply.
    c_eff = (d_range * scale_factor) * ch32
    dc = jnp.full((1,), d_center, jnp.float32)

    orig_shape = X.shape
    total = int(X.size)
    lane, tm, grid, rows_padded = _plan(total, X.dtype.itemsize, target_block_bytes)
    if tm % 16 == 0:
        chunk = 16 if lane <= 512 else 8   # keep x+acc+temps well inside 64 vregs
    elif tm % 8 == 0:
        chunk = 8
    else:
        chunk = tm

    Xf = X.reshape(-1)
    pad = rows_padded * lane - total
    if pad:
        # Ragged fallback only; pad-free layouts skip both HBM round trips.
        Xf = jnp.pad(Xf, (0, pad))
    X2 = Xf.reshape(rows_padded, lane)

    kernel = functools.partial(_dcp_kernel, hidden=hidden, chunk=chunk,
                               compute_dtype=compute_dtype)

    out2 = pl.pallas_call(
        kernel,
        out_shape=jax.ShapeDtypeStruct((rows_padded, lane), X.dtype),
        grid=(grid,),
        in_specs=[
            pl.BlockSpec(memory_space=pltpu.MemorySpace.SMEM),   # d_center (1,)
            pl.BlockSpec(memory_space=pltpu.MemorySpace.SMEM),   # a
            pl.BlockSpec(memory_space=pltpu.MemorySpace.SMEM),   # b
            pl.BlockSpec(memory_space=pltpu.MemorySpace.SMEM),   # c_eff
            pl.BlockSpec((tm, lane), lambda i: (i, 0)),          # X tile
        ],
        out_specs=pl.BlockSpec((tm, lane), lambda i: (i, 0)),
        compiler_params=pltpu.CompilerParams(dimension_semantics=("parallel",)),
    )(dc, a32, b32, c_eff, X2)

    if pad:
        return out2.reshape(-1)[:total].reshape(orig_shape)
    return out2.reshape(orig_shape)


def _reference(X, a, b, c_hat, dmin, dmax):
    """Pure-JAX reference mirroring the PyTorch forward (for self-check)."""
    d_center = (dmin + dmax) / 2.0
    d_range = (dmax - dmin) / 2.0
    ca_norm = jnp.linalg.norm(a) * jnp.linalg.norm(c_hat)
    scale_factor = 1.0 - jnp.maximum(ca_norm - 1.0, 0.0) / ca_norm
    c = scale_factor * c_hat
    Y = jnp.maximum(X[..., None] * a + b, 0.0) @ c
    return d_range * Y + d_center * X


if __name__ == "__main__":
    key = jax.random.PRNGKey(0)
    kx, ka, kb, kc = jax.random.split(key, 4)

    hidden_size = 32
    dmin, dmax = -0.5, 1.5

    X = jax.random.normal(kx, (2, 4, 16, 16), dtype=jnp.float32)
    a = jax.random.normal(ka, (hidden_size,), dtype=jnp.float32)
    b = jax.random.normal(kb, (hidden_size,), dtype=jnp.float32)
    c_hat = jax.random.normal(kc, (hidden_size,), dtype=jnp.float32)

    ref = _reference(X, a, b, c_hat, dmin, dmax)

    # 1) f32 VPU path (matches the PyTorch reference within tight tolerance).
    out = jax.block_until_ready(
        deriv_constrained_perceptron(X, a, b, c_hat, dmin, dmax,
                                     compute_dtype=jnp.float32))
    assert out.shape == X.shape and out.dtype == X.dtype
    assert jnp.allclose(out, ref, atol=1e-4, rtol=1e-4)

    # 2) Ragged, non-tile-aligned shape: exercises the padded fallback where
    #    the grid is chosen first (bounded padding, even grid).
    X_big = jax.random.normal(kx, (3, 7, 33, 65), dtype=jnp.float32)
    out_big = jax.block_until_ready(
        deriv_constrained_perceptron(X_big, a, b, c_hat, dmin, dmax,
                                     compute_dtype=jnp.float32))
    ref_big = _reference(X_big, a, b, c_hat, dmin, dmax)
    assert jnp.allclose(out_big, ref_big, atol=1e-4, rtol=1e-4)

    # 3) Auto compute dtype: packed bf16 hidden chain on v6e/v7x (looser
    #    tolerance vs the f32 reference), plain f32 path on v5e and older.
    out_auto = jax.block_until_ready(
        deriv_constrained_perceptron(X, a, b, c_hat, dmin, dmax))
    if _default_compute_dtype() == jnp.bfloat16:
        assert jnp.allclose(out_auto, ref, atol=3e-1, rtol=5e-2)
    else:
        assert jnp.allclose(out_auto, ref, atol=1e-4, rtol=1e-4)

    print("KERNEL_OK")
</pallas_src>

<mosaic_0001>
module attributes {stable_mosaic.version = 11 : i64} {
  func.func @_dcp_kernel(%arg0: i32, %arg1: memref<1xf32, #tpu.memory_space<smem>>, %arg2: memref<32xf32, #tpu.memory_space<smem>>, %arg3: memref<32xf32, #tpu.memory_space<smem>>, %arg4: memref<32xf32, #tpu.memory_space<smem>>, %arg5: memref<2x1024xf32, #tpu.memory_space<vmem>>, %arg6: memref<2x1024xf32, #tpu.memory_space<vmem>>) attributes {dimension_semantics = [#tpu.dimension_semantics<parallel>], iteration_bounds = array<i64: 1>, scalar_prefetch = 0 : i64, scratch_operands = 0 : i64, tpu.core_type = #tpu.core_type<tc>, window_params = [{transform_indices = @transform_0, window_bounds = array<i64: 1>}, {transform_indices = @transform_1, window_bounds = array<i64: 32>}, {transform_indices = @transform_2, window_bounds = array<i64: 32>}, {transform_indices = @transform_3, window_bounds = array<i64: 32>}, {transform_indices = @transform_4, window_bounds = array<i64: 2, 1024>}, {transform_indices = @transform_5, window_bounds = array<i64: 2, 1024>}]} {
    %c0 = arith.constant 0 : index
    %0 = memref.load %arg1[%c0] : memref<1xf32, #tpu.memory_space<smem>>
    %c0_0 = arith.constant 0 : index
    %1 = memref.load %arg2[%c0_0] : memref<32xf32, #tpu.memory_space<smem>>
    %c1 = arith.constant 1 : index
    %2 = memref.load %arg2[%c1] : memref<32xf32, #tpu.memory_space<smem>>
    %c2 = arith.constant 2 : index
    %3 = memref.load %arg2[%c2] : memref<32xf32, #tpu.memory_space<smem>>
    %c3 = arith.constant 3 : index
    %4 = memref.load %arg2[%c3] : memref<32xf32, #tpu.memory_space<smem>>
    %c4 = arith.constant 4 : index
    %5 = memref.load %arg2[%c4] : memref<32xf32, #tpu.memory_space<smem>>
    %c5 = arith.constant 5 : index
    %6 = memref.load %arg2[%c5] : memref<32xf32, #tpu.memory_space<smem>>
    %c6 = arith.constant 6 : index
    %7 = memref.load %arg2[%c6] : memref<32xf32, #tpu.memory_space<smem>>
    %c7 = arith.constant 7 : index
    %8 = memref.load %arg2[%c7] : memref<32xf32, #tpu.memory_space<smem>>
    %c8 = arith.constant 8 : index
    %9 = memref.load %arg2[%c8] : memref<32xf32, #tpu.memory_space<smem>>
    %c9 = arith.constant 9 : index
    %10 = memref.load %arg2[%c9] : memref<32xf32, #tpu.memory_space<smem>>
    %c10 = arith.constant 10 : index
    %11 = memref.load %arg2[%c10] : memref<32xf32, #tpu.memory_space<smem>>
    %c11 = arith.constant 11 : index
    %12 = memref.load %arg2[%c11] : memref<32xf32, #tpu.memory_space<smem>>
    %c12 = arith.constant 12 : index
    %13 = memref.load %arg2[%c12] : memref<32xf32, #tpu.memory_space<smem>>
    %c13 = arith.constant 13 : index
    %14 = memref.load %arg2[%c13] : memref<32xf32, #tpu.memory_space<smem>>
    %c14 = arith.constant 14 : index
    %15 = memref.load %arg2[%c14] : memref<32xf32, #tpu.memory_space<smem>>
    %c15 = arith.constant 15 : index
    %16 = memref.load %arg2[%c15] : memref<32xf32, #tpu.memory_space<smem>>
    %c16 = arith.constant 16 : index
    %17 = memref.load %arg2[%c16] : memref<32xf32, #tpu.memory_space<smem>>
    %c17 = arith.constant 17 : index
    %18 = memref.load %arg2[%c17] : memref<32xf32, #tpu.memory_space<smem>>
    %c18 = arith.constant 18 : index
    %19 = memref.load %arg2[%c18] : memref<32xf32, #tpu.memory_space<smem>>
    %c19 = arith.constant 19 : index
    %20 = memref.load %arg2[%c19] : memref<32xf32, #tpu.memory_space<smem>>
    %c20 = arith.constant 20 : index
    %21 = memref.load %arg2[%c20] : memref<32xf32, #tpu.memory_space<smem>>
    %c21 = arith.constant 21 : index
    %22 = memref.load %arg2[%c21] : memref<32xf32, #tpu.memory_space<smem>>
    %c22 = arith.constant 22 : index
    %23 = memref.load %arg2[%c22] : memref<32xf32, #tpu.memory_space<smem>>
    %c23 = arith.constant 23 : index
    %24 = memref.load %arg2[%c23] : memref<32xf32, #tpu.memory_space<smem>>
    %c24 = arith.constant 24 : index
    %25 = memref.load %arg2[%c24] : memref<32xf32, #tpu.memory_space<smem>>
    %c25 = arith.constant 25 : index
    %26 = memref.load %arg2[%c25] : memref<32xf32, #tpu.memory_space<smem>>
    %c26 = arith.constant 26 : index
    %27 = memref.load %arg2[%c26] : memref<32xf32, #tpu.memory_space<smem>>
    %c27 = arith.constant 27 : index
    %28 = memref.load %arg2[%c27] : memref<32xf32, #tpu.memory_space<smem>>
    %c28 = arith.constant 28 : index
    %29 = memref.load %arg2[%c28] : memref<32xf32, #tpu.memory_space<smem>>
    %c29 = arith.constant 29 : index
    %30 = memref.load %arg2[%c29] : memref<32xf32, #tpu.memory_space<smem>>
    %c30 = arith.constant 30 : index
    %31 = memref.load %arg2[%c30] : memref<32xf32, #tpu.memory_space<smem>>
    %c31 = arith.constant 31 : index
    %32 = memref.load %arg2[%c31] : memref<32xf32, #tpu.memory_space<smem>>
    %c0_1 = arith.constant 0 : index
    %33 = memref.load %arg3[%c0_1] : memref<32xf32, #tpu.memory_space<smem>>
    %c1_2 = arith.constant 1 : index
    %34 = memref.load %arg3[%c1_2] : memref<32xf32, #tpu.memory_space<smem>>
    %c2_3 = arith.constant 2 : index
    %35 = memref.load %arg3[%c2_3] : memref<32xf32, #tpu.memory_space<smem>>
    %c3_4 = arith.constant 3 : index
    %36 = memref.load %arg3[%c3_4] : memref<32xf32, #tpu.memory_space<smem>>
    %c4_5 = arith.constant 4 : index
    %37 = memref.load %arg3[%c4_5] : memref<32xf32, #tpu.memory_space<smem>>
    %c5_6 = arith.constant 5 : index
    %38 = memref.load %arg3[%c5_6] : memref<32xf32, #tpu.memory_space<smem>>
    %c6_7 = arith.constant 6 : index
    %39 = memref.load %arg3[%c6_7] : memref<32xf32, #tpu.memory_space<smem>>
    %c7_8 = arith.constant 7 : index
    %40 = memref.load %arg3[%c7_8] : memref<32xf32, #tpu.memory_space<smem>>
    %c8_9 = arith.constant 8 : index
    %41 = memref.load %arg3[%c8_9] : memref<32xf32, #tpu.memory_space<smem>>
    %c9_10 = arith.constant 9 : index
    %42 = memref.load %arg3[%c9_10] : memref<32xf32, #tpu.memory_space<smem>>
    %c10_11 = arith.constant 10 : index
    %43 = memref.load %arg3[%c10_11] : memref<32xf32, #tpu.memory_space<smem>>
    %c11_12 = arith.constant 11 : index
    %44 = memref.load %arg3[%c11_12] : memref<32xf32, #tpu.memory_space<smem>>
    %c12_13 = arith.constant 12 : index
    %45 = memref.load %arg3[%c12_13] : memref<32xf32, #tpu.memory_space<smem>>
    %c13_14 = arith.constant 13 : index
    %46 = memref.load %arg3[%c13_14] : memref<32xf32, #tpu.memory_space<smem>>
    %c14_15 = arith.constant 14 : index
    %47 = memref.load %arg3[%c14_15] : memref<32xf32, #tpu.memory_space<smem>>
    %c15_16 = arith.constant 15 : index
    %48 = memref.load %arg3[%c15_16] : memref<32xf32, #tpu.memory_space<smem>>
    %c16_17 = arith.constant 16 : index
    %49 = memref.load %arg3[%c16_17] : memref<32xf32, #tpu.memory_space<smem>>
    %c17_18 = arith.constant 17 : index
    %50 = memref.load %arg3[%c17_18] : memref<32xf32, #tpu.memory_space<smem>>
    %c18_19 = arith.constant 18 : index
    %51 = memref.load %arg3[%c18_19] : memref<32xf32, #tpu.memory_space<smem>>
    %c19_20 = arith.constant 19 : index
    %52 = memref.load %arg3[%c19_20] : memref<32xf32, #tpu.memory_space<smem>>
    %c20_21 = arith.constant 20 : index
    %53 = memref.load %arg3[%c20_21] : memref<32xf32, #tpu.memory_space<smem>>
    %c21_22 = arith.constant 21 : index
    %54 = memref.load %arg3[%c21_22] : memref<32xf32, #tpu.memory_space<smem>>
    %c22_23 = arith.constant 22 : index
    %55 = memref.load %arg3[%c22_23] : memref<32xf32, #tpu.memory_space<smem>>
    %c23_24 = arith.constant 23 : index
    %56 = memref.load %arg3[%c23_24] : memref<32xf32, #tpu.memory_space<smem>>
    %c24_25 = arith.constant 24 : index
    %57 = memref.load %arg3[%c24_25] : memref<32xf32, #tpu.memory_space<smem>>
    %c25_26 = arith.constant 25 : index
    %58 = memref.load %arg3[%c25_26] : memref<32xf32, #tpu.memory_space<smem>>
    %c26_27 = arith.constant 26 : index
    %59 = memref.load %arg3[%c26_27] : memref<32xf32, #tpu.memory_space<smem>>
    %c27_28 = arith.constant 27 : index
    %60 = memref.load %arg3[%c27_28] : memref<32xf32, #tpu.memory_space<smem>>
    %c28_29 = arith.constant 28 : index
    %61 = memref.load %arg3[%c28_29] : memref<32xf32, #tpu.memory_space<smem>>
    %c29_30 = arith.constant 29 : index
    %62 = memref.load %arg3[%c29_30] : memref<32xf32, #tpu.memory_space<smem>>
    %c30_31 = arith.constant 30 : index
    %63 = memref.load %arg3[%c30_31] : memref<32xf32, #tpu.memory_space<smem>>
    %c31_32 = arith.constant 31 : index
    %64 = memref.load %arg3[%c31_32] : memref<32xf32, #tpu.memory_space<smem>>
    %c0_33 = arith.constant 0 : index
    %65 = memref.load %arg4[%c0_33] : memref<32xf32, #tpu.memory_space<smem>>
    %c1_34 = arith.constant 1 : index
    %66 = memref.load %arg4[%c1_34] : memref<32xf32, #tpu.memory_space<smem>>
    %c2_35 = arith.constant 2 : index
    %67 = memref.load %arg4[%c2_35] : memref<32xf32, #tpu.memory_space<smem>>
    %c3_36 = arith.constant 3 : index
    %68 = memref.load %arg4[%c3_36] : memref<32xf32, #tpu.memory_space<smem>>
    %c4_37 = arith.constant 4 : index
    %69 = memref.load %arg4[%c4_37] : memref<32xf32, #tpu.memory_space<smem>>
    %c5_38 = arith.constant 5 : index
    %70 = memref.load %arg4[%c5_38] : memref<32xf32, #tpu.memory_space<smem>>
    %c6_39 = arith.constant 6 : index
    %71 = memref.load %arg4[%c6_39] : memref<32xf32, #tpu.memory_space<smem>>
    %c7_40 = arith.constant 7 : index
    %72 = memref.load %arg4[%c7_40] : memref<32xf32, #tpu.memory_space<smem>>
    %c8_41 = arith.constant 8 : index
    %73 = memref.load %arg4[%c8_41] : memref<32xf32, #tpu.memory_space<smem>>
    %c9_42 = arith.constant 9 : index
    %74 = memref.load %arg4[%c9_42] : memref<32xf32, #tpu.memory_space<smem>>
    %c10_43 = arith.constant 10 : index
    %75 = memref.load %arg4[%c10_43] : memref<32xf32, #tpu.memory_space<smem>>
    %c11_44 = arith.constant 11 : index
    %76 = memref.load %arg4[%c11_44] : memref<32xf32, #tpu.memory_space<smem>>
    %c12_45 = arith.constant 12 : index
    %77 = memref.load %arg4[%c12_45] : memref<32xf32, #tpu.memory_space<smem>>
    %c13_46 = arith.constant 13 : index
    %78 = memref.load %arg4[%c13_46] : memref<32xf32, #tpu.memory_space<smem>>
    %c14_47 = arith.constant 14 : index
    %79 = memref.load %arg4[%c14_47] : memref<32xf32, #tpu.memory_space<smem>>
    %c15_48 = arith.constant 15 : index
    %80 = memref.load %arg4[%c15_48] : memref<32xf32, #tpu.memory_space<smem>>
    %c16_49 = arith.constant 16 : index
    %81 = memref.load %arg4[%c16_49] : memref<32xf32, #tpu.memory_space<smem>>
    %c17_50 = arith.constant 17 : index
    %82 = memref.load %arg4[%c17_50] : memref<32xf32, #tpu.memory_space<smem>>
    %c18_51 = arith.constant 18 : index
    %83 = memref.load %arg4[%c18_51] : memref<32xf32, #tpu.memory_space<smem>>
    %c19_52 = arith.constant 19 : index
    %84 = memref.load %arg4[%c19_52] : memref<32xf32, #tpu.memory_space<smem>>
    %c20_53 = arith.constant 20 : index
    %85 = memref.load %arg4[%c20_53] : memref<32xf32, #tpu.memory_space<smem>>
    %c21_54 = arith.constant 21 : index
    %86 = memref.load %arg4[%c21_54] : memref<32xf32, #tpu.memory_space<smem>>
    %c22_55 = arith.constant 22 : index
    %87 = memref.load %arg4[%c22_55] : memref<32xf32, #tpu.memory_space<smem>>
    %c23_56 = arith.constant 23 : index
    %88 = memref.load %arg4[%c23_56] : memref<32xf32, #tpu.memory_space<smem>>
    %c24_57 = arith.constant 24 : index
    %89 = memref.load %arg4[%c24_57] : memref<32xf32, #tpu.memory_space<smem>>
    %c25_58 = arith.constant 25 : index
    %90 = memref.load %arg4[%c25_58] : memref<32xf32, #tpu.memory_space<smem>>
    %c26_59 = arith.constant 26 : index
    %91 = memref.load %arg4[%c26_59] : memref<32xf32, #tpu.memory_space<smem>>
    %c27_60 = arith.constant 27 : index
    %92 = memref.load %arg4[%c27_60] : memref<32xf32, #tpu.memory_space<smem>>
    %c28_61 = arith.constant 28 : index
    %93 = memref.load %arg4[%c28_61] : memref<32xf32, #tpu.memory_space<smem>>
    %c29_62 = arith.constant 29 : index
    %94 = memref.load %arg4[%c29_62] : memref<32xf32, #tpu.memory_space<smem>>
    %c30_63 = arith.constant 30 : index
    %95 = memref.load %arg4[%c30_63] : memref<32xf32, #tpu.memory_space<smem>>
    %c31_64 = arith.constant 31 : index
    %96 = memref.load %arg4[%c31_64] : memref<32xf32, #tpu.memory_space<smem>>
    %c0_i32 = arith.constant 0 : i32
    %c1_i32 = arith.constant 1 : i32
    %97 = arith.muli %c0_i32, %c1_i32 : i32
    %c0_i32_65 = arith.constant 0 : i32
    %98 = arith.addi %c0_i32_65, %97 : i32
    %c2_i32 = arith.constant 2 : i32
    %99 = arith.muli %98, %c2_i32 : i32
    %100 = tpu.assume_multiple %99, 2 : i32
    %101 = arith.index_cast %100 : i32 to index
    %c0_66 = arith.constant 0 : index
    %102 = vector.load %arg5[%101, %c0_66] : memref<2x1024xf32, #tpu.memory_space<vmem>>, vector<2x1024xf32>
    %cst = arith.constant 0.000000e+00 : f32
    %103 = vector.broadcast %cst : f32 to vector<2x1024xf32>
    %104 = vector.broadcast %1 : f32 to vector<2x1024xf32>
    %105 = arith.mulf %104, %102 : vector<2x1024xf32>
    %106 = vector.broadcast %33 : f32 to vector<2x1024xf32>
    %107 = arith.addf %105, %106 : vector<2x1024xf32>
    %cst_67 = arith.constant 0.000000e+00 : f32
    %108 = vector.broadcast %cst_67 : f32 to vector<2x1024xf32>
    %109 = arith.maximumf %107, %108 : vector<2x1024xf32>
    %110 = vector.broadcast %65 : f32 to vector<2x1024xf32>
    %111 = arith.mulf %109, %110 : vector<2x1024xf32>
    %112 = arith.addf %103, %111 : vector<2x1024xf32>
    %113 = vector.broadcast %2 : f32 to vector<2x1024xf32>
    %114 = arith.mulf %113, %102 : vector<2x1024xf32>
    %115 = vector.broadcast %34 : f32 to vector<2x1024xf32>
    %116 = arith.addf %114, %115 : vector<2x1024xf32>
    %cst_68 = arith.constant 0.000000e+00 : f32
    %117 = vector.broadcast %cst_68 : f32 to vector<2x1024xf32>
    %118 = arith.maximumf %116, %117 : vector<2x1024xf32>
    %119 = vector.broadcast %66 : f32 to vector<2x1024xf32>
    %120 = arith.mulf %118, %119 : vector<2x1024xf32>
    %121 = arith.addf %112, %120 : vector<2x1024xf32>
    %122 = vector.broadcast %3 : f32 to vector<2x1024xf32>
    %123 = arith.mulf %122, %102 : vector<2x1024xf32>
    %124 = vector.broadcast %35 : f32 to vector<2x1024xf32>
    %125 = arith.addf %123, %124 : vector<2x1024xf32>
    %cst_69 = arith.constant 0.000000e+00 : f32
    %126 = vector.broadcast %cst_69 : f32 to vector<2x1024xf32>
    %127 = arith.maximumf %125, %126 : vector<2x1024xf32>
    %128 = vector.broadcast %67 : f32 to vector<2x1024xf32>
    %129 = arith.mulf %127, %128 : vector<2x1024xf32>
    %130 = arith.addf %121, %129 : vector<2x1024xf32>
    %131 = vector.broadcast %4 : f32 to vector<2x1024xf32>
    %132 = arith.mulf %131, %102 : vector<2x1024xf32>
    %133 = vector.broadcast %36 : f32 to vector<2x1024xf32>
    %134 = arith.addf %132, %133 : vector<2x1024xf32>
    %cst_70 = arith.constant 0.000000e+00 : f32
    %135 = vector.broadcast %cst_70 : f32 to vector<2x1024xf32>
    %136 = arith.maximumf %134, %135 : vector<2x1024xf32>
    %137 = vector.broadcast %68 : f32 to vector<2x1024xf32>
    %138 = arith.mulf %136, %137 : vector<2x1024xf32>
    %139 = arith.addf %130, %138 : vector<2x1024xf32>
    %140 = vector.broadcast %5 : f32 to vector<2x1024xf32>
    %141 = arith.mulf %140, %102 : vector<2x1024xf32>
    %142 = vector.broadcast %37 : f32 to vector<2x1024xf32>
    %143 = arith.addf %141, %142 : vector<2x1024xf32>
    %cst_71 = arith.constant 0.000000e+00 : f32
    %144 = vector.broadcast %cst_71 : f32 to vector<2x1024xf32>
    %145 = arith.maximumf %143, %144 : vector<2x1024xf32>
    %146 = vector.broadcast %69 : f32 to vector<2x1024xf32>
    %147 = arith.mulf %145, %146 : vector<2x1024xf32>
    %148 = arith.addf %139, %147 : vector<2x1024xf32>
    %149 = vector.broadcast %6 : f32 to vector<2x1024xf32>
    %150 = arith.mulf %149, %102 : vector<2x1024xf32>
    %151 = vector.broadcast %38 : f32 to vector<2x1024xf32>
    %152 = arith.addf %150, %151 : vector<2x1024xf32>
    %cst_72 = arith.constant 0.000000e+00 : f32
    %153 = vector.broadcast %cst_72 : f32 to vector<2x1024xf32>
    %154 = arith.maximumf %152, %153 : vector<2x1024xf32>
    %155 = vector.broadcast %70 : f32 to vector<2x1024xf32>
    %156 = arith.mulf %154, %155 : vector<2x1024xf32>
    %157 = arith.addf %148, %156 : vector<2x1024xf32>
    %158 = vector.broadcast %7 : f32 to vector<2x1024xf32>
    %159 = arith.mulf %158, %102 : vector<2x1024xf32>
    %160 = vector.broadcast %39 : f32 to vector<2x1024xf32>
    %161 = arith.addf %159, %160 : vector<2x1024xf32>
    %cst_73 = arith.constant 0.000000e+00 : f32
    %162 = vector.broadcast %cst_73 : f32 to vector<2x1024xf32>
    %163 = arith.maximumf %161, %162 : vector<2x1024xf32>
    %164 = vector.broadcast %71 : f32 to vector<2x1024xf32>
    %165 = arith.mulf %163, %164 : vector<2x1024xf32>
    %166 = arith.addf %157, %165 : vector<2x1024xf32>
    %167 = vector.broadcast %8 : f32 to vector<2x1024xf32>
    %168 = arith.mulf %167, %102 : vector<2x1024xf32>
    %169 = vector.broadcast %40 : f32 to vector<2x1024xf32>
    %170 = arith.addf %168, %169 : vector<2x1024xf32>
    %cst_74 = arith.constant 0.000000e+00 : f32
    %171 = vector.broadcast %cst_74 : f32 to vector<2x1024xf32>
    %172 = arith.maximumf %170, %171 : vector<2x1024xf32>
    %173 = vector.broadcast %72 : f32 to vector<2x1024xf32>
    %174 = arith.mulf %172, %173 : vector<2x1024xf32>
    %175 = arith.addf %166, %174 : vector<2x1024xf32>
    %176 = vector.broadcast %9 : f32 to vector<2x1024xf32>
    %177 = arith.mulf %176, %102 : vector<2x1024xf32>
    %178 = vector.broadcast %41 : f32 to vector<2x1024xf32>
    %179 = arith.addf %177, %178 : vector<2x1024xf32>
    %cst_75 = arith.constant 0.000000e+00 : f32
    %180 = vector.broadcast %cst_75 : f32 to vector<2x1024xf32>
    %181 = arith.maximumf %179, %180 : vector<2x1024xf32>
    %182 = vector.broadcast %73 : f32 to vector<2x1024xf32>
    %183 = arith.mulf %181, %182 : vector<2x1024xf32>
    %184 = arith.addf %175, %183 : vector<2x1024xf32>
    %185 = vector.broadcast %10 : f32 to vector<2x1024xf32>
    %186 = arith.mulf %185, %102 : vector<2x1024xf32>
    %187 = vector.broadcast %42 : f32 to vector<2x1024xf32>
    %188 = arith.addf %186, %187 : vector<2x1024xf32>
    %cst_76 = arith.constant 0.000000e+00 : f32
    %189 = vector.broadcast %cst_76 : f32 to vector<2x1024xf32>
    %190 = arith.maximumf %188, %189 : vector<2x1024xf32>
    %191 = vector.broadcast %74 : f32 to vector<2x1024xf32>
    %192 = arith.mulf %190, %191 : vector<2x1024xf32>
    %193 = arith.addf %184, %192 : vector<2x1024xf32>
    %194 = vector.broadcast %11 : f32 to vector<2x1024xf32>
    %195 = arith.mulf %194, %102 : vector<2x1024xf32>
    %196 = vector.broadcast %43 : f32 to vector<2x1024xf32>
    %197 = arith.addf %195, %196 : vector<2x1024xf32>
    %cst_77 = arith.constant 0.000000e+00 : f32
    %198 = vector.broadcast %cst_77 : f32 to vector<2x1024xf32>
    %199 = arith.maximumf %197, %198 : vector<2x1024xf32>
    %200 = vector.broadcast %75 : f32 to vector<2x1024xf32>
    %201 = arith.mulf %199, %200 : vector<2x1024xf32>
    %202 = arith.addf %193, %201 : vector<2x1024xf32>
    %203 = vector.broadcast %12 : f32 to vector<2x1024xf32>
    %204 = arith.mulf %203, %102 : vector<2x1024xf32>
    %205 = vector.broadcast %44 : f32 to vector<2x1024xf32>
    %206 = arith.addf %204, %205 : vector<2x1024xf32>
    %cst_78 = arith.constant 0.000000e+00 : f32
    %207 = vector.broadcast %cst_78 : f32 to vector<2x1024xf32>
    %208 = arith.maximumf %206, %207 : vector<2x1024xf32>
    %209 = vector.broadcast %76 : f32 to vector<2x1024xf32>
    %210 = arith.mulf %208, %209 : vector<2x1024xf32>
    %211 = arith.addf %202, %210 : vector<2x1024xf32>
    %212 = vector.broadcast %13 : f32 to vector<2x1024xf32>
    %213 = arith.mulf %212, %102 : vector<2x1024xf32>
    %214 = vector.broadcast %45 : f32 to vector<2x1024xf32>
    %215 = arith.addf %213, %214 : vector<2x1024xf32>
    %cst_79 = arith.constant 0.000000e+00 : f32
    %216 = vector.broadcast %cst_79 : f32 to vector<2x1024xf32>
    %217 = arith.maximumf %215, %216 : vector<2x1024xf32>
    %218 = vector.broadcast %77 : f32 to vector<2x1024xf32>
    %219 = arith.mulf %217, %218 : vector<2x1024xf32>
    %220 = arith.addf %211, %219 : vector<2x1024xf32>
    %221 = vector.broadcast %14 : f32 to vector<2x1024xf32>
    %222 = arith.mulf %221, %102 : vector<2x1024xf32>
    %223 = vector.broadcast %46 : f32 to vector<2x1024xf32>
    %224 = arith.addf %222, %223 : vector<2x1024xf32>
    %cst_80 = arith.constant 0.000000e+00 : f32
    %225 = vector.broadcast %cst_80 : f32 to vector<2x1024xf32>
    %226 = arith.maximumf %224, %225 : vector<2x1024xf32>
    %227 = vector.broadcast %78 : f32 to vector<2x1024xf32>
    %228 = arith.mulf %226, %227 : vector<2x1024xf32>
    %229 = arith.addf %220, %228 : vector<2x1024xf32>
    %230 = vector.broadcast %15 : f32 to vector<2x1024xf32>
    %231 = arith.mulf %230, %102 : vector<2x1024xf32>
    %232 = vector.broadcast %47 : f32 to vector<2x1024xf32>
    %233 = arith.addf %231, %232 : vector<2x1024xf32>
    %cst_81 = arith.constant 0.000000e+00 : f32
    %234 = vector.broadcast %cst_81 : f32 to vector<2x1024xf32>
    %235 = arith.maximumf %233, %234 : vector<2x1024xf32>
    %236 = vector.broadcast %79 : f32 to vector<2x1024xf32>
    %237 = arith.mulf %235, %236 : vector<2x1024xf32>
    %238 = arith.addf %229, %237 : vector<2x1024xf32>
    %239 = vector.broadcast %16 : f32 to vector<2x1024xf32>
    %240 = arith.mulf %239, %102 : vector<2x1024xf32>
    %241 = vector.broadcast %48 : f32 to vector<2x1024xf32>
    %242 = arith.addf %240, %241 : vector<2x1024xf32>
    %cst_82 = arith.constant 0.000000e+00 : f32
    %243 = vector.broadcast %cst_82 : f32 to vector<2x1024xf32>
    %244 = arith.maximumf %242, %243 : vector<2x1024xf32>
    %245 = vector.broadcast %80 : f32 to vector<2x1024xf32>
    %246 = arith.mulf %244, %245 : vector<2x1024xf32>
    %247 = arith.addf %238, %246 : vector<2x1024xf32>
    %248 = vector.broadcast %17 : f32 to vector<2x1024xf32>
    %249 = arith.mulf %248, %102 : vector<2x1024xf32>
    %250 = vector.broadcast %49 : f32 to vector<2x1024xf32>
    %251 = arith.addf %249, %250 : vector<2x1024xf32>
    %cst_83 = arith.constant 0.000000e+00 : f32
    %252 = vector.broadcast %cst_83 : f32 to vector<2x1024xf32>
    %253 = arith.maximumf %251, %252 : vector<2x1024xf32>
    %254 = vector.broadcast %81 : f32 to vector<2x1024xf32>
    %255 = arith.mulf %253, %254 : vector<2x1024xf32>
    %256 = arith.addf %247, %255 : vector<2x1024xf32>
    %257 = vector.broadcast %18 : f32 to vector<2x1024xf32>
    %258 = arith.mulf %257, %102 : vector<2x1024xf32>
    %259 = vector.broadcast %50 : f32 to vector<2x1024xf32>
    %260 = arith.addf %258, %259 : vector<2x1024xf32>
    %cst_84 = arith.constant 0.000000e+00 : f32
    %261 = vector.broadcast %cst_84 : f32 to vector<2x1024xf32>
    %262 = arith.maximumf %260, %261 : vector<2x1024xf32>
    %263 = vector.broadcast %82 : f32 to vector<2x1024xf32>
    %264 = arith.mulf %262, %263 : vector<2x1024xf32>
    %265 = arith.addf %256, %264 : vector<2x1024xf32>
    %266 = vector.broadcast %19 : f32 to vector<2x1024xf32>
    %267 = arith.mulf %266, %102 : vector<2x1024xf32>
    %268 = vector.broadcast %51 : f32 to vector<2x1024xf32>
    %269 = arith.addf %267, %268 : vector<2x1024xf32>
    %cst_85 = arith.constant 0.000000e+00 : f32
    %270 = vector.broadcast %cst_85 : f32 to vector<2x1024xf32>
    %271 = arith.maximumf %269, %270 : vector<2x1024xf32>
    %272 = vector.broadcast %83 : f32 to vector<2x1024xf32>
    %273 = arith.mulf %271, %272 : vector<2x1024xf32>
    %274 = arith.addf %265, %273 : vector<2x1024xf32>
    %275 = vector.broadcast %20 : f32 to vector<2x1024xf32>
    %276 = arith.mulf %275, %102 : vector<2x1024xf32>
    %277 = vector.broadcast %52 : f32 to vector<2x1024xf32>
    %278 = arith.addf %276, %277 : vector<2x1024xf32>
    %cst_86 = arith.constant 0.000000e+00 : f32
    %279 = vector.broadcast %cst_86 : f32 to vector<2x1024xf32>
    %280 = arith.maximumf %278, %279 : vector<2x1024xf32>
    %281 = vector.broadcast %84 : f32 to vector<2x1024xf32>
    %282 = arith.mulf %280, %281 : vector<2x1024xf32>
    %283 = arith.addf %274, %282 : vector<2x1024xf32>
    %284 = vector.broadcast %21 : f32 to vector<2x1024xf32>
    %285 = arith.mulf %284, %102 : vector<2x1024xf32>
    %286 = vector.broadcast %53 : f32 to vector<2x1024xf32>
    %287 = arith.addf %285, %286 : vector<2x1024xf32>
    %cst_87 = arith.constant 0.000000e+00 : f32
    %288 = vector.broadcast %cst_87 : f32 to vector<2x1024xf32>
    %289 = arith.maximumf %287, %288 : vector<2x1024xf32>
    %290 = vector.broadcast %85 : f32 to vector<2x1024xf32>
    %291 = arith.mulf %289, %290 : vector<2x1024xf32>
    %292 = arith.addf %283, %291 : vector<2x1024xf32>
    %293 = vector.broadcast %22 : f32 to vector<2x1024xf32>
    %294 = arith.mulf %293, %102 : vector<2x1024xf32>
    %295 = vector.broadcast %54 : f32 to vector<2x1024xf32>
    %296 = arith.addf %294, %295 : vector<2x1024xf32>
    %cst_88 = arith.constant 0.000000e+00 : f32
    %297 = vector.broadcast %cst_88 : f32 to vector<2x1024xf32>
    %298 = arith.maximumf %296, %297 : vector<2x1024xf32>
    %299 = vector.broadcast %86 : f32 to vector<2x1024xf32>
    %300 = arith.mulf %298, %299 : vector<2x1024xf32>
    %301 = arith.addf %292, %300 : vector<2x1024xf32>
    %302 = vector.broadcast %23 : f32 to vector<2x1024xf32>
    %303 = arith.mulf %302, %102 : vector<2x1024xf32>
    %304 = vector.broadcast %55 : f32 to vector<2x1024xf32>
    %305 = arith.addf %303, %304 : vector<2x1024xf32>
    %cst_89 = arith.constant 0.000000e+00 : f32
    %306 = vector.broadcast %cst_89 : f32 to vector<2x1024xf32>
    %307 = arith.maximumf %305, %306 : vector<2x1024xf32>
    %308 = vector.broadcast %87 : f32 to vector<2x1024xf32>
    %309 = arith.mulf %307, %308 : vector<2x1024xf32>
    %310 = arith.addf %301, %309 : vector<2x1024xf32>
    %311 = vector.broadcast %24 : f32 to vector<2x1024xf32>
    %312 = arith.mulf %311, %102 : vector<2x1024xf32>
    %313 = vector.broadcast %56 : f32 to vector<2x1024xf32>
    %314 = arith.addf %312, %313 : vector<2x1024xf32>
    %cst_90 = arith.constant 0.000000e+00 : f32
    %315 = vector.broadcast %cst_90 : f32 to vector<2x1024xf32>
    %316 = arith.maximumf %314, %315 : vector<2x1024xf32>
    %317 = vector.broadcast %88 : f32 to vector<2x1024xf32>
    %318 = arith.mulf %316, %317 : vector<2x1024xf32>
    %319 = arith.addf %310, %318 : vector<2x1024xf32>
    %320 = vector.broadcast %25 : f32 to vector<2x1024xf32>
    %321 = arith.mulf %320, %102 : vector<2x1024xf32>
    %322 = vector.broadcast %57 : f32 to vector<2x1024xf32>
    %323 = arith.addf %321, %322 : vector<2x1024xf32>
    %cst_91 = arith.constant 0.000000e+00 : f32
    %324 = vector.broadcast %cst_91 : f32 to vector<2x1024xf32>
    %325 = arith.maximumf %323, %324 : vector<2x1024xf32>
    %326 = vector.broadcast %89 : f32 to vector<2x1024xf32>
    %327 = arith.mulf %325, %326 : vector<2x1024xf32>
    %328 = arith.addf %319, %327 : vector<2x1024xf32>
    %329 = vector.broadcast %26 : f32 to vector<2x1024xf32>
    %330 = arith.mulf %329, %102 : vector<2x1024xf32>
    %331 = vector.broadcast %58 : f32 to vector<2x1024xf32>
    %332 = arith.addf %330, %331 : vector<2x1024xf32>
    %cst_92 = arith.constant 0.000000e+00 : f32
    %333 = vector.broadcast %cst_92 : f32 to vector<2x1024xf32>
    %334 = arith.maximumf %332, %333 : vector<2x1024xf32>
    %335 = vector.broadcast %90 : f32 to vector<2x1024xf32>
    %336 = arith.mulf %334, %335 : vector<2x1024xf32>
    %337 = arith.addf %328, %336 : vector<2x1024xf32>
    %338 = vector.broadcast %27 : f32 to vector<2x1024xf32>
    %339 = arith.mulf %338, %102 : vector<2x1024xf32>
    %340 = vector.broadcast %59 : f32 to vector<2x1024xf32>
    %341 = arith.addf %339, %340 : vector<2x1024xf32>
    %cst_93 = arith.constant 0.000000e+00 : f32
    %342 = vector.broadcast %cst_93 : f32 to vector<2x1024xf32>
    %343 = arith.maximumf %341, %342 : vector<2x1024xf32>
    %344 = vector.broadcast %91 : f32 to vector<2x1024xf32>
    %345 = arith.mulf %343, %344 : vector<2x1024xf32>
    %346 = arith.addf %337, %345 : vector<2x1024xf32>
    %347 = vector.broadcast %28 : f32 to vector<2x1024xf32>
    %348 = arith.mulf %347, %102 : vector<2x1024xf32>
    %349 = vector.broadcast %60 : f32 to vector<2x1024xf32>
    %350 = arith.addf %348, %349 : vector<2x1024xf32>
    %cst_94 = arith.constant 0.000000e+00 : f32
    %351 = vector.broadcast %cst_94 : f32 to vector<2x1024xf32>
    %352 = arith.maximumf %350, %351 : vector<2x1024xf32>
    %353 = vector.broadcast %92 : f32 to vector<2x1024xf32>
    %354 = arith.mulf %352, %353 : vector<2x1024xf32>
    %355 = arith.addf %346, %354 : vector<2x1024xf32>
    %356 = vector.broadcast %29 : f32 to vector<2x1024xf32>
    %357 = arith.mulf %356, %102 : vector<2x1024xf32>
    %358 = vector.broadcast %61 : f32 to vector<2x1024xf32>
    %359 = arith.addf %357, %358 : vector<2x1024xf32>
    %cst_95 = arith.constant 0.000000e+00 : f32
    %360 = vector.broadcast %cst_95 : f32 to vector<2x1024xf32>
    %361 = arith.maximumf %359, %360 : vector<2x1024xf32>
    %362 = vector.broadcast %93 : f32 to vector<2x1024xf32>
    %363 = arith.mulf %361, %362 : vector<2x1024xf32>
    %364 = arith.addf %355, %363 : vector<2x1024xf32>
    %365 = vector.broadcast %30 : f32 to vector<2x1024xf32>
    %366 = arith.mulf %365, %102 : vector<2x1024xf32>
    %367 = vector.broadcast %62 : f32 to vector<2x1024xf32>
    %368 = arith.addf %366, %367 : vector<2x1024xf32>
    %cst_96 = arith.constant 0.000000e+00 : f32
    %369 = vector.broadcast %cst_96 : f32 to vector<2x1024xf32>
    %370 = arith.maximumf %368, %369 : vector<2x1024xf32>
    %371 = vector.broadcast %94 : f32 to vector<2x1024xf32>
    %372 = arith.mulf %370, %371 : vector<2x1024xf32>
    %373 = arith.addf %364, %372 : vector<2x1024xf32>
    %374 = vector.broadcast %31 : f32 to vector<2x1024xf32>
    %375 = arith.mulf %374, %102 : vector<2x1024xf32>
    %376 = vector.broadcast %63 : f32 to vector<2x1024xf32>
    %377 = arith.addf %375, %376 : vector<2x1024xf32>
    %cst_97 = arith.constant 0.000000e+00 : f32
    %378 = vector.broadcast %cst_97 : f32 to vector<2x1024xf32>
    %379 = arith.maximumf %377, %378 : vector<2x1024xf32>
    %380 = vector.broadcast %95 : f32 to vector<2x1024xf32>
    %381 = arith.mulf %379, %380 : vector<2x1024xf32>
    %382 = arith.addf %373, %381 : vector<2x1024xf32>
    %383 = vector.broadcast %32 : f32 to vector<2x1024xf32>
    %384 = arith.mulf %383, %102 : vector<2x1024xf32>
    %385 = vector.broadcast %64 : f32 to vector<2x1024xf32>
    %386 = arith.addf %384, %385 : vector<2x1024xf32>
    %cst_98 = arith.constant 0.000000e+00 : f32
    %387 = vector.broadcast %cst_98 : f32 to vector<2x1024xf32>
    %388 = arith.maximumf %386, %387 : vector<2x1024xf32>
    %389 = vector.broadcast %96 : f32 to vector<2x1024xf32>
    %390 = arith.mulf %388, %389 : vector<2x1024xf32>
    %391 = arith.addf %382, %390 : vector<2x1024xf32>
    %392 = vector.broadcast %0 : f32 to vector<2x1024xf32>
    %393 = arith.mulf %392, %102 : vector<2x1024xf32>
    %394 = arith.addf %393, %391 : vector<2x1024xf32>
    %395 = arith.index_cast %100 : i32 to index
    %c0_99 = arith.constant 0 : index
    %396 = vector.load %arg6[%395, %c0_99] : memref<2x1024xf32, #tpu.memory_space<vmem>>, vector<2x1024xf32>
    tpu.vector_store %arg6[%395, %c0_99], %394 {strides = array<i32>} : memref<2x1024xf32, #tpu.memory_space<vmem>>, vector<2x1024xf32>,
    %c1_i32_100 = arith.constant 1 : i32
    return
  }
  func.func @transform_0(%arg0: i32) -> i32 {
    %c0_i32 = arith.constant 0 : i32
    %c0_i32_0 = arith.constant 0 : i32
    return %c0_i32 : i32
  }
  func.func @transform_1(%arg0: i32) -> i32 {
    %c0_i32 = arith.constant 0 : i32
    %c0_i32_0 = arith.constant 0 : i32
    return %c0_i32 : i32
  }
  func.func @transform_2(%arg0: i32) -> i32 {
    %c0_i32 = arith.constant 0 : i32
    %c0_i32_0 = arith.constant 0 : i32
    return %c0_i32 : i32
  }
  func.func @transform_3(%arg0: i32) -> i32 {
    %c0_i32 = arith.constant 0 : i32
    %c0_i32_0 = arith.constant 0 : i32
    return %c0_i32 : i32
  }
  func.func @transform_4(%arg0: i32) -> (i32, i32) {
    %c0_i32 = arith.constant 0 : i32
    %c0_i32_0 = arith.constant 0 : i32
    return %arg0, %c0_i32 : i32, i32
  }
  func.func @transform_5(%arg0: i32) -> (i32, i32) {
    %c0_i32 = arith.constant 0 : i32
    %c0_i32_0 = arith.constant 0 : i32
    return %arg0, %c0_i32 : i32, i32
  }
}

</mosaic_0001>

<llo_original>
// kernel: tpu_custom_call.1
$region0: #{tpu_custom_call.1}
  #allocation0 [shape = 'u32[]', space=smem, size = 0x4, offset = 0x4, fixed_abs, tag = 'smem constant byte address 0x4 - core index']
  #allocation1 [shape = 'u32[144,128]{1,0:T(1,128)}', space=vmem, size = 0x12000, scoped, tag = 'internal scratch']
  #allocation2 [shape = 'f32[1]{0:T(128)S(6)}', space=smem, size = 0x200, scoped, tag = 'scoped memory for tpu_custom_call.1']
  %s0 = inlined_call_operand.<no memory space> [shape: f32[1], index: 0, kind: input, shape index: {}]
  %s1 = inlined_call_operand.vmem [shape: f32[32], index: 1, kind: input, shape index: {}]
  %s2 = inlined_call_operand.vmem [shape: f32[32], index: 2, kind: input, shape index: {}]
  %s3 = inlined_call_operand.vmem [shape: f32[32], index: 3, kind: input, shape index: {}]
  %s4 = inlined_call_operand.hbm [shape: f32[2,1024], index: 4, kind: input, shape index: {}]
  %s5 = inlined_call_operand.hbm [shape: f32[2,1024], index: 5, kind: output, shape index: {}]
  %s6 = sld [smem:[#allocation0]]
  $region46: #{tpu_custom_call.1} parent=0
    _
  %s8 = ssub.s32 1, %s6
  %s9 = scalar_select 0, %s8, %s6
  %10 = sst [smem:[#allocation2]] %s0
  $region1: #{tpu_custom_call.1} parent=0
    #allocation3 [shape = 'u8[512]{0}', space=smem, size = 0x200, scoped, tag = 'input window, operand 1, single buffered']
    #allocation4 [shape = 's32[1]{0}', space=sflag, size = 0x4, scoped, tag = 'scoped memory for tpu_custom_call.1']
    #allocation5 [shape = 's32[1]{0}', space=sflag, size = 0x4, scoped, tag = 'scoped memory for tpu_custom_call.1']
    #allocation6 [shape = 's32[1]{0}', space=sflag, size = 0x4, scoped, tag = 'scoped memory for tpu_custom_call.1']
    #allocation7 [shape = 'u8[512]{0}', space=smem, size = 0x200, scoped, tag = 'input window, operand 2, single buffered']
    #allocation8 [shape = 's32[1]{0}', space=sflag, size = 0x4, scoped, tag = 'scoped memory for tpu_custom_call.1']
    #allocation9 [shape = 'u8[512]{0}', space=smem, size = 0x200, scoped, tag = 'input window, operand 3, single buffered']
    #allocation10 [shape = 'u8[8192]{0}', space=vmem, size = 0x2000, scoped, tag = 'input window, operand 4, single buffered']
    #allocation11 [shape = 'u8[8192]{0}', space=vmem, size = 0x2000, scoped, tag = 'output window, operand 0, single buffered']
    %11 = vsyncpa [#allocation6], 0
    %12 = vsyncpa [#allocation8], 0
    %13 = vsyncpa [#allocation4], 0
    %14 = vsyncpa [#allocation5], 0
    // Predicated region
    $region2: #{tpu_custom_call.1} parent=1 // pred_check
      _
    $region3: #{tpu_custom_call.1} parent=1 // pred_check_branch
      %16 = sbr.rel (0) target = $region5
    $region4: #{tpu_custom_call.1} parent=1 // pred_region
      _
    $region5: #{tpu_custom_call.1} parent=1 // pred_fallthru
      _
    // Predicated region
    $region6: #{tpu_custom_call.1} parent=1 // pred_check
      _
    $region7: #{tpu_custom_call.1} parent=1 // pred_check_branch
      %18 = sbr.rel (0) target = $region9
    $region8: #{tpu_custom_call.1} parent=1 // pred_region
      %s20 = ssub.s32 16, 16
      %21 = vsyncadd [#allocation6], %s20
      %s23 = sshll.u32 %s1, 4
      %s24 = int_to_ptr.vmem [resolvable:$true] %s23
      %26 = dma.vmem_to_smem %s24, 16, [#allocation3], [#allocation6]
    $region9: #{tpu_custom_call.1} parent=1 // pred_fallthru
      _
    // Predicated region
    $region10: #{tpu_custom_call.1} parent=1 // pred_check
      _
    $region11: #{tpu_custom_call.1} parent=1 // pred_check_branch
      %28 = sbr.rel (0) target = $region13
    $region12: #{tpu_custom_call.1} parent=1 // pred_region
      %s30 = ssub.s32 16, 16
      %31 = vsyncadd [#allocation8], %s30
      %s33 = sshll.u32 %s2, 4
      %s34 = int_to_ptr.vmem [resolvable:$true] %s33
      %36 = dma.vmem_to_smem %s34, 16, [#allocation7], [#allocation8]
    $region13: #{tpu_custom_call.1} parent=1 // pred_fallthru
      _
    // Predicated region
    $region14: #{tpu_custom_call.1} parent=1 // pred_check
      _
    $region15: #{tpu_custom_call.1} parent=1 // pred_check_branch
      %38 = sbr.rel (0) target = $region17
    $region16: #{tpu_custom_call.1} parent=1 // pred_region
      %s40 = ssub.s32 16, 16
      %41 = vsyncadd [#allocation8], %s40
      %s43 = sshll.u32 %s3, 4
      %s44 = int_to_ptr.vmem [resolvable:$true] %s43
      %46 = dma.vmem_to_smem %s44, 16, [#allocation9], [#allocation8]
    $region17: #{tpu_custom_call.1} parent=1 // pred_fallthru
      _
    // Predicated region
    $region18: #{tpu_custom_call.1} parent=1 // pred_check
      _
    $region19: #{tpu_custom_call.1} parent=1 // pred_check_branch
      %48 = sbr.rel (0) target = $region21
    $region20: #{tpu_custom_call.1} parent=1 // pred_region
      %s50 = ssub.s32 256, 256
      %51 = vsyncadd [#allocation4], %s50
      %s53 = sshll.u32 [#allocation10], 4
      %s54 = int_to_ptr.vmem [resolvable:$true] %s53
      %56 = dma.hbm_to_vmem [thread:$0]  %s4, 256, %s54, [#allocation4]
    $region21: #{tpu_custom_call.1} parent=1 // pred_fallthru
      _
    // Predicated region
    $region22: #{tpu_custom_call.1} parent=1 // pred_check
      _
    $region23: #{tpu_custom_call.1} parent=1 // pred_check_branch
      %58 = sbr.rel (0) target = $region25
    $region24: #{tpu_custom_call.1} parent=1 // pred_region
      %59 = dma.done [#allocation6], 16
    $region25: #{tpu_custom_call.1} parent=1 // pred_fallthru
      _
    // Predicated region
    $region26: #{tpu_custom_call.1} parent=1 // pred_check
      _
    $region27: #{tpu_custom_call.1} parent=1 // pred_check_branch
      %61 = sbr.rel (0) target = $region29
    $region28: #{tpu_custom_call.1} parent=1 // pred_region
      %62 = dma.done [#allocation8], 16
    $region29: #{tpu_custom_call.1} parent=1 // pred_fallthru
      _
    // Predicated region
    $region30: #{tpu_custom_call.1} parent=1 // pred_check
      _
    $region31: #{tpu_custom_call.1} parent=1 // pred_check_branch
      %64 = sbr.rel (0) target = $region33
    $region32: #{tpu_custom_call.1} parent=1 // pred_region
      %65 = dma.done [#allocation8], 16
    $region33: #{tpu_custom_call.1} parent=1 // pred_fallthru
      _
    // Predicated region
    $region34: #{tpu_custom_call.1} parent=1 // pred_check
      _
    $region35: #{tpu_custom_call.1} parent=1 // pred_check_branch
      %67 = sbr.rel (0) target = $region37
    $region36: #{tpu_custom_call.1} parent=1 // pred_region
      %68 = dma.done [#allocation4], 256
    $region37: #{tpu_custom_call.1} parent=1 // pred_fallthru
      _
    %69 = sfence
    %s70 = sld [smem:[#allocation2]]
    %s71 = sld [smem:[#allocation3]]
    %s72 = sld [smem:[#allocation3 + $0x1]]
    %s73 = sld [smem:[#allocation3 + $0x2]]
    %s74 = sld [smem:[#allocation3 + $0x3]]
    %s75 = sld [smem:[#allocation3 + $0x4]]
    %s76 = sld [smem:[#allocation3 + $0x5]]
    %s77 = sld [smem:[#allocation3 + $0x6]]
    %s78 = sld [smem:[#allocation3 + $0x7]]
    %s79 = sld [smem:[#allocation3 + $0x8]]
    %s80 = sld [smem:[#allocation3 + $0x9]]
    %s81 = sld [smem:[#allocation3 + $0xa]]
    %s82 = sld [smem:[#allocation3 + $0xb]]
    %s83 = sld [smem:[#allocation3 + $0xc]]
    %s84 = sld [smem:[#allocation3 + $0xd]]
    %s85 = sld [smem:[#allocation3 + $0xe]]
    %s86 = sld [smem:[#allocation3 + $0xf]]
    %s87 = sld [smem:[#allocation3 + $0x10]]
    %s88 = sld [smem:[#allocation3 + $0x11]]
    %s89 = sld [smem:[#allocation3 + $0x12]]
    %s90 = sld [smem:[#allocation3 + $0x13]]
    %s91 = sld [smem:[#allocation3 + $0x14]]
    %s92 = sld [smem:[#allocation3 + $0x15]]
    %s93 = sld [smem:[#allocation3 + $0x16]]
    %s94 = sld [smem:[#allocation3 + $0x17]]
    %s95 = sld [smem:[#allocation3 + $0x18]]
    %s96 = sld [smem:[#allocation3 + $0x19]]
    %s97 = sld [smem:[#allocation3 + $0x1a]]
    %s98 = sld [smem:[#allocation3 + $0x1b]]
    %s99 = sld [smem:[#allocation3 + $0x1c]]
    %s100 = sld [smem:[#allocation3 + $0x1d]]
    %s101 = sld [smem:[#allocation3 + $0x1e]]
    %s102 = sld [smem:[#allocation3 + $0x1f]]
    %s103 = sld [smem:[#allocation7]]
    %s104 = sld [smem:[#allocation7 + $0x1]]
    %s105 = sld [smem:[#allocation7 + $0x2]]
    %s106 = sld [smem:[#allocation7 + $0x3]]
    %s107 = sld [smem:[#allocation7 + $0x4]]
    %s108 = sld [smem:[#allocation7 + $0x5]]
    %s109 = sld [smem:[#allocation7 + $0x6]]
    %s110 = sld [smem:[#allocation7 + $0x7]]
    %s111 = sld [smem:[#allocation7 + $0x8]]
    %s112 = sld [smem:[#allocation7 + $0x9]]
    %s113 = sld [smem:[#allocation7 + $0xa]]
    %s114 = sld [smem:[#allocation7 + $0xb]]
    %s115 = sld [smem:[#allocation7 + $0xc]]
    %s116 = sld [smem:[#allocation7 + $0xd]]
    %s117 = sld [smem:[#allocation7 + $0xe]]
    %s118 = sld [smem:[#allocation7 + $0xf]]
    %s119 = sld [smem:[#allocation7 + $0x10]]
    %s120 = sld [smem:[#allocation7 + $0x11]]
    %s121 = sld [smem:[#allocation7 + $0x12]]
    %s122 = sld [smem:[#allocation7 + $0x13]]
    %s123 = sld [smem:[#allocation7 + $0x14]]
    %s124 = sld [smem:[#allocation7 + $0x15]]
    %s125 = sld [smem:[#allocation7 + $0x16]]
    %s126 = sld [smem:[#allocation7 + $0x17]]
    %s127 = sld [smem:[#allocation7 + $0x18]]
    %s128 = sld [smem:[#allocation7 + $0x19]]
    %s129 = sld [smem:[#allocation7 + $0x1a]]
    %s130 = sld [smem:[#allocation7 + $0x1b]]
    %s131 = sld [smem:[#allocation7 + $0x1c]]
    %s132 = sld [smem:[#allocation7 + $0x1d]]
    %s133 = sld [smem:[#allocation7 + $0x1e]]
    %s134 = sld [smem:[#allocation7 + $0x1f]]
    %s135 = sld [smem:[#allocation9]]
    %s136 = sld [smem:[#allocation9 + $0x1]]
    %s137 = sld [smem:[#allocation9 + $0x2]]
    %s138 = sld [smem:[#allocation9 + $0x3]]
    %s139 = sld [smem:[#allocation9 + $0x4]]
    %s140 = sld [smem:[#allocation9 + $0x5]]
    %s141 = sld [smem:[#allocation9 + $0x6]]
    %s142 = sld [smem:[#allocation9 + $0x7]]
    %s143 = sld [smem:[#allocation9 + $0x8]]
    %s144 = sld [smem:[#allocation9 + $0x9]]
    %s145 = sld [smem:[#allocation9 + $0xa]]
    %s146 = sld [smem:[#allocation9 + $0xb]]
    %s147 = sld [smem:[#allocation9 + $0xc]]
    %s148 = sld [smem:[#allocation9 + $0xd]]
    %s149 = sld [smem:[#allocation9 + $0xe]]
    %s150 = sld [smem:[#allocation9 + $0xf]]
    %s151 = sld [smem:[#allocation9 + $0x10]]
    %s152 = sld [smem:[#allocation9 + $0x11]]
    %s153 = sld [smem:[#allocation9 + $0x12]]
    %s154 = sld [smem:[#allocation9 + $0x13]]
    %s155 = sld [smem:[#allocation9 + $0x14]]
    %s156 = sld [smem:[#allocation9 + $0x15]]
    %s157 = sld [smem:[#allocation9 + $0x16]]
    %s158 = sld [smem:[#allocation9 + $0x17]]
    %s159 = sld [smem:[#allocation9 + $0x18]]
    %s160 = sld [smem:[#allocation9 + $0x19]]
    %s161 = sld [smem:[#allocation9 + $0x1a]]
    %s162 = sld [smem:[#allocation9 + $0x1b]]
    %s163 = sld [smem:[#allocation9 + $0x1c]]
    %s164 = sld [smem:[#allocation9 + $0x1d]]
    %s165 = sld [smem:[#allocation9 + $0x1e]]
    %s166 = sld [smem:[#allocation9 + $0x1f]]
    %s167 = smul.u32 0, 8
    %s168 = smul.addr %s167, 2
    %s169 = scalar_lea.vmem [#allocation10], %s168
    %v170 = vld [vmem:[%s169] sm:$0xff]
    %v171 = vld [vmem:[%s169 + $0x8] sm:$0xff]
    %v172 = vstv %s71
    %v173 = vmul.f32 %v172, %v170
    %v174 = vmul.f32 %v172, %v171
    %v175 = vstv %s103
    %v176 = vadd.f32 %v173, %v175
    %v177 = vadd.f32 %v174, %v175
    %v178 = vmax.f32 %v176, 0.0
    %v179 = vmax.f32 %v177, 0.0
    %v180 = vstv %s135
    %v181 = vmul.f32 %v178, %v180
    %v182 = vmul.f32 %v179, %v180
    %v183 = vadd.f32 %v181, 0.0
    %v184 = vadd.f32 %v182, 0.0
    %v185 = vstv %s72
    %v186 = vmul.f32 %v185, %v170
    %v187 = vmul.f32 %v185, %v171
    %v188 = vstv %s104
    %v189 = vadd.f32 %v186, %v188
    %v190 = vadd.f32 %v187, %v188
    %v191 = vmax.f32 %v189, 0.0
    %v192 = vmax.f32 %v190, 0.0
    %v193 = vstv %s136
    %v194 = vmul.f32 %v191, %v193
    %v195 = vmul.f32 %v192, %v193
    %v196 = vadd.f32 %v183, %v194
    %v197 = vadd.f32 %v184, %v195
    %v198 = vstv %s73
    %v199 = vmul.f32 %v198, %v170
    %v200 = vmul.f32 %v198, %v171
    %v201 = vstv %s105
    %v202 = vadd.f32 %v199, %v201
    %v203 = vadd.f32 %v200, %v201
    %v204 = vmax.f32 %v202, 0.0
    %v205 = vmax.f32 %v203, 0.0
    %v206 = vstv %s137
    %v207 = vmul.f32 %v204, %v206
    %v208 = vmul.f32 %v205, %v206
    %v209 = vadd.f32 %v196, %v207
    %v210 = vadd.f32 %v197, %v208
    %v211 = vstv %s74
    %v212 = vmul.f32 %v211, %v170
    %v213 = vmul.f32 %v211, %v171
    %v214 = vstv %s106
    %v215 = vadd.f32 %v212, %v214
    %v216 = vadd.f32 %v213, %v214
    %v217 = vmax.f32 %v215, 0.0
    %v218 = vmax.f32 %v216, 0.0
    %v219 = vstv %s138
    %v220 = vmul.f32 %v217, %v219
    %v221 = vmul.f32 %v218, %v219
    %v222 = vadd.f32 %v209, %v220
    %v223 = vadd.f32 %v210, %v221
    %v224 = vstv %s75
    %v225 = vmul.f32 %v224, %v170
    %v226 = vmul.f32 %v224, %v171
    %v227 = vstv %s107
    %v228 = vadd.f32 %v225, %v227
    %v229 = vadd.f32 %v226, %v227
    %v230 = vmax.f32 %v228, 0.0
    %v231 = vmax.f32 %v229, 0.0
    %v232 = vstv %s139
    %v233 = vmul.f32 %v230, %v232
    %v234 = vmul.f32 %v231, %v232
    %v235 = vadd.f32 %v222, %v233
    %v236 = vadd.f32 %v223, %v234
    %v237 = vstv %s76
    %v238 = vmul.f32 %v237, %v170
    %v239 = vmul.f32 %v237, %v171
    %v240 = vstv %s108
    %v241 = vadd.f32 %v238, %v240
    %v242 = vadd.f32 %v239, %v240
    %v243 = vmax.f32 %v241, 0.0
    %v244 = vmax.f32 %v242, 0.0
    %v245 = vstv %s140
    %v246 = vmul.f32 %v243, %v245
    %v247 = vmul.f32 %v244, %v245
    %v248 = vadd.f32 %v235, %v246
    %v249 = vadd.f32 %v236, %v247
    %v250 = vstv %s77
    %v251 = vmul.f32 %v250, %v170
    %v252 = vmul.f32 %v250, %v171
    %v253 = vstv %s109
    %v254 = vadd.f32 %v251, %v253
    %v255 = vadd.f32 %v252, %v253
    %v256 = vmax.f32 %v254, 0.0
    %v257 = vmax.f32 %v255, 0.0
    %v258 = vstv %s141
    %v259 = vmul.f32 %v256, %v258
    %v260 = vmul.f32 %v257, %v258
    %v261 = vadd.f32 %v248, %v259
    %v262 = vadd.f32 %v249, %v260
    %v263 = vstv %s78
    %v264 = vmul.f32 %v263, %v170
    %v265 = vmul.f32 %v263, %v171
    %v266 = vstv %s110
    %v267 = vadd.f32 %v264, %v266
    %v268 = vadd.f32 %v265, %v266
    %v269 = vmax.f32 %v267, 0.0
    %v270 = vmax.f32 %v268, 0.0
    %v271 = vstv %s142
    %v272 = vmul.f32 %v269, %v271
    %v273 = vmul.f32 %v270, %v271
    %v274 = vadd.f32 %v261, %v272
    %v275 = vadd.f32 %v262, %v273
    %v276 = vstv %s79
    %v277 = vmul.f32 %v276, %v170
    %v278 = vmul.f32 %v276, %v171
    %v279 = vstv %s111
    %v280 = vadd.f32 %v277, %v279
    %v281 = vadd.f32 %v278, %v279
    %v282 = vmax.f32 %v280, 0.0
    %v283 = vmax.f32 %v281, 0.0
    %v284 = vstv %s143
    %v285 = vmul.f32 %v282, %v284
    %v286 = vmul.f32 %v283, %v284
    %v287 = vadd.f32 %v274, %v285
    %v288 = vadd.f32 %v275, %v286
    %v289 = vstv %s80
    %v290 = vmul.f32 %v289, %v170
    %v291 = vmul.f32 %v289, %v171
    %v292 = vstv %s112
    %v293 = vadd.f32 %v290, %v292
    %v294 = vadd.f32 %v291, %v292
    %v295 = vmax.f32 %v293, 0.0
    %v296 = vmax.f32 %v294, 0.0
    %v297 = vstv %s144
    %v298 = vmul.f32 %v295, %v297
    %v299 = vmul.f32 %v296, %v297
    %v300 = vadd.f32 %v287, %v298
    %v301 = vadd.f32 %v288, %v299
    %v302 = vstv %s81
    %v303 = vmul.f32 %v302, %v170
    %v304 = vmul.f32 %v302, %v171
    %v305 = vstv %s113
    %v306 = vadd.f32 %v303, %v305
    %v307 = vadd.f32 %v304, %v305
    %v308 = vmax.f32 %v306, 0.0
    %v309 = vmax.f32 %v307, 0.0
    %v310 = vstv %s145
    %v311 = vmul.f32 %v308, %v310
    %v312 = vmul.f32 %v309, %v310
    %v313 = vadd.f32 %v300, %v311
    %v314 = vadd.f32 %v301, %v312
    %v315 = vstv %s82
    %v316 = vmul.f32 %v315, %v170
    %v317 = vmul.f32 %v315, %v171
    %v318 = vstv %s114
    %v319 = vadd.f32 %v316, %v318
    %v320 = vadd.f32 %v317, %v318
    %v321 = vmax.f32 %v319, 0.0
    %v322 = vmax.f32 %v320, 0.0
    %v323 = vstv %s146
    %v324 = vmul.f32 %v321, %v323
    %v325 = vmul.f32 %v322, %v323
    %v326 = vadd.f32 %v313, %v324
    %v327 = vadd.f32 %v314, %v325
    %v328 = vstv %s83
    %v329 = vmul.f32 %v328, %v170
    %v330 = vmul.f32 %v328, %v171
    %v331 = vstv %s115
    %v332 = vadd.f32 %v329, %v331
    %v333 = vadd.f32 %v330, %v331
    %v334 = vmax.f32 %v332, 0.0
    %v335 = vmax.f32 %v333, 0.0
    %v336 = vstv %s147
    %v337 = vmul.f32 %v334, %v336
    %v338 = vmul.f32 %v335, %v336
    %v339 = vadd.f32 %v326, %v337
    %v340 = vadd.f32 %v327, %v338
    %v341 = vstv %s84
    %v342 = vmul.f32 %v341, %v170
    %v343 = vmul.f32 %v341, %v171
    %v344 = vstv %s116
    %v345 = vadd.f32 %v342, %v344
    %v346 = vadd.f32 %v343, %v344
    %v347 = vmax.f32 %v345, 0.0
    %v348 = vmax.f32 %v346, 0.0
    %v349 = vstv %s148
    %v350 = vmul.f32 %v347, %v349
    %v351 = vmul.f32 %v348, %v349
    %v352 = vadd.f32 %v339, %v350
    %v353 = vadd.f32 %v340, %v351
    %v354 = vstv %s85
    %v355 = vmul.f32 %v354, %v170
    %v356 = vmul.f32 %v354, %v171
    %v357 = vstv %s117
    %v358 = vadd.f32 %v355, %v357
    %v359 = vadd.f32 %v356, %v357
    %v360 = vmax.f32 %v358, 0.0
    %v361 = vmax.f32 %v359, 0.0
    %v362 = vstv %s149
    %v363 = vmul.f32 %v360, %v362
    %v364 = vmul.f32 %v361, %v362
    %v365 = vadd.f32 %v352, %v363
    %v366 = vadd.f32 %v353, %v364
    %v367 = vstv %s86
    %v368 = vmul.f32 %v367, %v170
    %v369 = vmul.f32 %v367, %v171
    %v370 = vstv %s118
    %v371 = vadd.f32 %v368, %v370
    %v372 = vadd.f32 %v369, %v370
    %v373 = vmax.f32 %v371, 0.0
    %v374 = vmax.f32 %v372, 0.0
    %v375 = vstv %s150
    %v376 = vmul.f32 %v373, %v375
    %v377 = vmul.f32 %v374, %v375
    %v378 = vadd.f32 %v365, %v376
    %v379 = vadd.f32 %v366, %v377
    %v380 = vstv %s87
    %v381 = vmul.f32 %v380, %v170
    %v382 = vmul.f32 %v380, %v171
    %v383 = vstv %s119
    %v384 = vadd.f32 %v381, %v383
    %v385 = vadd.f32 %v382, %v383
    %v386 = vmax.f32 %v384, 0.0
    %v387 = vmax.f32 %v385, 0.0
    %v388 = vstv %s151
    %v389 = vmul.f32 %v386, %v388
    %v390 = vmul.f32 %v387, %v388
    %v391 = vadd.f32 %v378, %v389
    %v392 = vadd.f32 %v379, %v390
    %v393 = vstv %s88
    %v394 = vmul.f32 %v393, %v170
    %v395 = vmul.f32 %v393, %v171
    %v396 = vstv %s120
    %v397 = vadd.f32 %v394, %v396
    %v398 = vadd.f32 %v395, %v396
    %v399 = vmax.f32 %v397, 0.0
    %v400 = vmax.f32 %v398, 0.0
    %v401 = vstv %s152
    %v402 = vmul.f32 %v399, %v401
    %v403 = vmul.f32 %v400, %v401
    %v404 = vadd.f32 %v391, %v402
    %v405 = vadd.f32 %v392, %v403
    %v406 = vstv %s89
    %v407 = vmul.f32 %v406, %v170
    %v408 = vmul.f32 %v406, %v171
    %v409 = vstv %s121
    %v410 = vadd.f32 %v407, %v409
    %v411 = vadd.f32 %v408, %v409
    %v412 = vmax.f32 %v410, 0.0
    %v413 = vmax.f32 %v411, 0.0
    %v414 = vstv %s153
    %v415 = vmul.f32 %v412, %v414
    %v416 = vmul.f32 %v413, %v414
    %v417 = vadd.f32 %v404, %v415
    %v418 = vadd.f32 %v405, %v416
    %v419 = vstv %s90
    %v420 = vmul.f32 %v419, %v170
    %v421 = vmul.f32 %v419, %v171
    %v422 = vstv %s122
    %v423 = vadd.f32 %v420, %v422
    %v424 = vadd.f32 %v421, %v422
    %v425 = vmax.f32 %v423, 0.0
    %v426 = vmax.f32 %v424, 0.0
    %v427 = vstv %s154
    %v428 = vmul.f32 %v425, %v427
    %v429 = vmul.f32 %v426, %v427
    %v430 = vadd.f32 %v417, %v428
    %v431 = vadd.f32 %v418, %v429
    %v432 = vstv %s91
    %v433 = vmul.f32 %v432, %v170
    %v434 = vmul.f32 %v432, %v171
    %v435 = vstv %s123
    %v436 = vadd.f32 %v433, %v435
    %v437 = vadd.f32 %v434, %v435
    %v438 = vmax.f32 %v436, 0.0
    %v439 = vmax.f32 %v437, 0.0
    %v440 = vstv %s155
    %v441 = vmul.f32 %v438, %v440
    %v442 = vmul.f32 %v439, %v440
    %v443 = vadd.f32 %v430, %v441
    %v444 = vadd.f32 %v431, %v442
    %v445 = vstv %s92
    %v446 = vmul.f32 %v445, %v170
    %v447 = vmul.f32 %v445, %v171
    %v448 = vstv %s124
    %v449 = vadd.f32 %v446, %v448
    %v450 = vadd.f32 %v447, %v448
    %v451 = vmax.f32 %v449, 0.0
    %v452 = vmax.f32 %v450, 0.0
    %v453 = vstv %s156
    %v454 = vmul.f32 %v451, %v453
    %v455 = vmul.f32 %v452, %v453
    %v456 = vadd.f32 %v443, %v454
    %v457 = vadd.f32 %v444, %v455
    %v458 = vstv %s93
    %v459 = vmul.f32 %v458, %v170
    %v460 = vmul.f32 %v458, %v171
    %v461 = vstv %s125
    %v462 = vadd.f32 %v459, %v461
    %v463 = vadd.f32 %v460, %v461
    %v464 = vmax.f32 %v462, 0.0
    %v465 = vmax.f32 %v463, 0.0
    %v466 = vstv %s157
    %v467 = vmul.f32 %v464, %v466
    %v468 = vmul.f32 %v465, %v466
    %v469 = vadd.f32 %v456, %v467
    %v470 = vadd.f32 %v457, %v468
    %v471 = vstv %s94
    %v472 = vmul.f32 %v471, %v170
    %v473 = vmul.f32 %v471, %v171
    %v474 = vstv %s126
    %v475 = vadd.f32 %v472, %v474
    %v476 = vadd.f32 %v473, %v474
    %v477 = vmax.f32 %v475, 0.0
    %v478 = vmax.f32 %v476, 0.0
    %v479 = vstv %s158
    %v480 = vmul.f32 %v477, %v479
    %v481 = vmul.f32 %v478, %v479
    %v482 = vadd.f32 %v469, %v480
    %v483 = vadd.f32 %v470, %v481
    %v484 = vstv %s95
    %v485 = vmul.f32 %v484, %v170
    %v486 = vmul.f32 %v484, %v171
    %v487 = vstv %s127
    %v488 = vadd.f32 %v485, %v487
    %v489 = vadd.f32 %v486, %v487
    %v490 = vmax.f32 %v488, 0.0
    %v491 = vmax.f32 %v489, 0.0
    %v492 = vstv %s159
    %v493 = vmul.f32 %v490, %v492
    %v494 = vmul.f32 %v491, %v492
    %v495 = vadd.f32 %v482, %v493
    %v496 = vadd.f32 %v483, %v494
    %v497 = vstv %s96
    %v498 = vmul.f32 %v497, %v170
    %v499 = vmul.f32 %v497, %v171
    %v500 = vstv %s128
    %v501 = vadd.f32 %v498, %v500
    %v502 = vadd.f32 %v499, %v500
    %v503 = vmax.f32 %v501, 0.0
    %v504 = vmax.f32 %v502, 0.0
    %v505 = vstv %s160
    %v506 = vmul.f32 %v503, %v505
    %v507 = vmul.f32 %v504, %v505
    %v508 = vadd.f32 %v495, %v506
    %v509 = vadd.f32 %v496, %v507
    %v510 = vstv %s97
    %v511 = vmul.f32 %v510, %v170
    %v512 = vmul.f32 %v510, %v171
    %v513 = vstv %s129
    %v514 = vadd.f32 %v511, %v513
    %v515 = vadd.f32 %v512, %v513
    %v516 = vmax.f32 %v514, 0.0
    %v517 = vmax.f32 %v515, 0.0
    %v518 = vstv %s161
    %v519 = vmul.f32 %v516, %v518
    %v520 = vmul.f32 %v517, %v518
    %v521 = vadd.f32 %v508, %v519
    %v522 = vadd.f32 %v509, %v520
    %v523 = vstv %s98
    %v524 = vmul.f32 %v523, %v170
    %v525 = vmul.f32 %v523, %v171
    %v526 = vstv %s130
    %v527 = vadd.f32 %v524, %v526
    %v528 = vadd.f32 %v525, %v526
    %v529 = vmax.f32 %v527, 0.0
    %v530 = vmax.f32 %v528, 0.0
    %v531 = vstv %s162
    %v532 = vmul.f32 %v529, %v531
    %v533 = vmul.f32 %v530, %v531
    %v534 = vadd.f32 %v521, %v532
    %v535 = vadd.f32 %v522, %v533
    %v536 = vstv %s99
    %v537 = vmul.f32 %v536, %v170
    %v538 = vmul.f32 %v536, %v171
    %v539 = vstv %s131
    %v540 = vadd.f32 %v537, %v539
    %v541 = vadd.f32 %v538, %v539
    %v542 = vmax.f32 %v540, 0.0
    %v543 = vmax.f32 %v541, 0.0
    %v544 = vstv %s163
    %v545 = vmul.f32 %v542, %v544
    %v546 = vmul.f32 %v543, %v544
    %v547 = vadd.f32 %v534, %v545
    %v548 = vadd.f32 %v535, %v546
    %v549 = vstv %s100
    %v550 = vmul.f32 %v549, %v170
    %v551 = vmul.f32 %v549, %v171
    %v552 = vstv %s132
    %v553 = vadd.f32 %v550, %v552
    %v554 = vadd.f32 %v551, %v552
    %v555 = vmax.f32 %v553, 0.0
    %v556 = vmax.f32 %v554, 0.0
    %v557 = vstv %s164
    %v558 = vmul.f32 %v555, %v557
    %v559 = vmul.f32 %v556, %v557
    %v560 = vadd.f32 %v547, %v558
    %v561 = vadd.f32 %v548, %v559
    %v562 = vstv %s101
    %v563 = vmul.f32 %v562, %v170
    %v564 = vmul.f32 %v562, %v171
    %v565 = vstv %s133
    %v566 = vadd.f32 %v563, %v565
    %v567 = vadd.f32 %v564, %v565
    %v568 = vmax.f32 %v566, 0.0
    %v569 = vmax.f32 %v567, 0.0
    %v570 = vstv %s165
    %v571 = vmul.f32 %v568, %v570
    %v572 = vmul.f32 %v569, %v570
    %v573 = vadd.f32 %v560, %v571
    %v574 = vadd.f32 %v561, %v572
    %v575 = vstv %s102
    %v576 = vmul.f32 %v575, %v170
    %v577 = vmul.f32 %v575, %v171
    %v578 = vstv %s134
    %v579 = vadd.f32 %v576, %v578
    %v580 = vadd.f32 %v577, %v578
    %v581 = vmax.f32 %v579, 0.0
    %v582 = vmax.f32 %v580, 0.0
    %v583 = vstv %s166
    %v584 = vmul.f32 %v581, %v583
    %v585 = vmul.f32 %v582, %v583
    %v586 = vadd.f32 %v573, %v584
    %v587 = vadd.f32 %v574, %v585
    %v588 = vstv %s70
    %v589 = vmul.f32 %v588, %v170
    %v590 = vmul.f32 %v588, %v171
    %v591 = vadd.f32 %v589, %v586
    %v592 = vadd.f32 %v590, %v587
    %s593 = smul.addr %s167, 2
    %s594 = scalar_lea.vmem [#allocation11], %s593
    %595 = vst [vmem:[%s594] sm:$0xff] %v591
    %596 = vst [vmem:[%s594 + $0x8] sm:$0xff] %v592
    // Predicated region
    $region38: #{tpu_custom_call.1} parent=1 // pred_check
      _
    $region39: #{tpu_custom_call.1} parent=1 // pred_check_branch
      %598 = sbr.rel (0) target = $region41
    $region40: #{tpu_custom_call.1} parent=1 // pred_region
      %s600 = ssub.s32 256, 256
      %601 = vsyncadd [#allocation5], %s600
      %s603 = sshll.u32 [#allocation11], 4
      %s604 = int_to_ptr.vmem [resolvable:$true] %s603
      %606 = dma.vmem_to_hbm [thread:$0]  %s604, 256, %s5, [#allocation5]
    $region41: #{tpu_custom_call.1} parent=1 // pred_fallthru
      _
    // Predicated region
    $region42: #{tpu_custom_call.1} parent=1 // pred_check
      _
    $region43: #{tpu_custom_call.1} parent=1 // pred_check_branch
      %608 = sbr.rel (0) target = $region45
    $region44: #{tpu_custom_call.1} parent=1 // pred_region
      %609 = dma.done [#allocation5], 256
    $region45: #{tpu_custom_call.1} parent=1 // pred_fallthru
      _
    %610 = vsyncpa [#allocation4], 1
    %611 = vsyncpa [#allocation5], 1
    %612 = vsyncpa [#allocation6], 1
    %613 = vsyncpa [#allocation8], 1

</llo_original>
